<compile_context>
chip_gen: v7x
topology: tpu7x:2x2x1
jax: 0.10.0
libtpu: 0.0.40
codegen_flags: <defaults>
</compile_context>

<pallas_src>
import numpy as np
import jax
import jax.numpy as jnp
from jax.experimental import pallas as pl
from jax.experimental.pallas import tpu as pltpu


def upsample_block_forward(x_nchw, w_oihw, b, gamma, beta, *, eps=1e-5):
    """Forward pass of UpsampleBlock.

    x_nchw: (N, Cin, H, W) float32
    w_oihw: (Cout, Cin, KH, KW) conv weight (PyTorch layout)
    b:      (Cout,) conv bias
    gamma, beta: (Cout,) BatchNorm affine params
    Returns (N, Cout, 2H, 2W) float32 (for odd square kernels).
    """
    N, Cin, H, W = x_nchw.shape
    Cout, _, KH, KW = w_oihw.shape

    # PyTorch F.pad order is (w_left, w_right, h_top, h_bottom); the module builds
    # pad_size = ((KH-1)//2,)*2 + ((KW-1)//2,)*2, so W is padded by (KH-1)//2 and
    # H by (KW-1)//2 (identical for square kernels -- mirrors the module literally).
    pad_w = (KH - 1) // 2
    pad_h = (KW - 1) // 2

    Hup, Wup = 2 * H, 2 * W
    Hp, Wp = Hup + 2 * pad_h, Wup + 2 * pad_w
    Hout, Wout = Hp - KH + 1, Wp - KW + 1
    L = Hout * Wout          # valid output positions per batch
    NL = N * L               # batch folded onto the lane axis
    K = KH * KW * Cin        # contraction size of the im2col matmul

    f32 = jnp.float32

    # ---- XLA prologue (tiny fusion): nearest-2x upsample + reflect pad + im2col ----
    up = jnp.repeat(jnp.repeat(x_nchw.astype(f32), 2, axis=2), 2, axis=3)
    xp = jnp.pad(up, ((0, 0), (0, 0), (pad_h, pad_h), (pad_w, pad_w)), mode="reflect")
    taps = [xp[:, :, i:i + Hout, j:j + Wout] for i in range(KH) for j in range(KW)]
    cols = jnp.stack(taps, axis=1).reshape(N, K, L)        # rows ordered (tap, cin)
    cols = jnp.transpose(cols, (1, 0, 2)).reshape(K, NL)   # (K, N*L), lane-dense

    # Weights as (Cout, K): column (i*KW + j)*Cin + c == cols row order.
    w_flat = jnp.transpose(w_oihw, (0, 2, 3, 1)).reshape(Cout, K).astype(f32)
    b2 = b.reshape(Cout, 1).astype(f32)
    g2 = gamma.reshape(Cout, 1).astype(f32)
    be2 = beta.reshape(Cout, 1).astype(f32)

    inv_count = 1.0 / float(NL)

    # ---------- fused kernel: conv (1 MXU matmul) + bias + ReLU + BatchNorm ----------
    def fused_kernel(cols_ref, w_ref, b_ref, g_ref, be_ref, out_ref):
        # conv as a single aligned MXU matmul with f32 accumulation
        # (keep f32 operands; bf16 cast only worthwhile at larger channel counts)
        y = jnp.dot(w_ref[...], cols_ref[...], preferred_element_type=f32)
        y = jnp.maximum(y + b_ref[...], 0.0)                        # bias + ReLU
        # training-mode BatchNorm over (batch, spatial) == the lane axis
        mean = jnp.sum(y, axis=1, keepdims=True) * inv_count         # (Cout, 1)
        yc = y - mean
        var = jnp.sum(yc * yc, axis=1, keepdims=True) * inv_count    # (Cout, 1)
        scale = g_ref[...] * jax.lax.rsqrt(var + eps)
        out_ref[...] = yc * scale + be_ref[...]

    y_flat = pl.pallas_call(
        fused_kernel,
        out_shape=jax.ShapeDtypeStruct((Cout, NL), f32),
        grid=(1,),
        in_specs=[
            pl.BlockSpec((K, NL), lambda i: (0, 0)),
            pl.BlockSpec((Cout, K), lambda i: (0, 0)),
            pl.BlockSpec((Cout, 1), lambda i: (0, 0)),
            pl.BlockSpec((Cout, 1), lambda i: (0, 0)),
            pl.BlockSpec((Cout, 1), lambda i: (0, 0)),
        ],
        out_specs=pl.BlockSpec((Cout, NL), lambda i: (0, 0)),
        compiler_params=pltpu.CompilerParams(
            dimension_semantics=("arbitrary",)),
    )(cols, w_flat, b2, g2, be2)

    # ---- epilogue: (Cout, N*L) -> (N, Cout, Hout, Wout) -----------------------------
    return jnp.transpose(y_flat.reshape(Cout, N, Hout, Wout), (1, 0, 2, 3))


def reference_forward(x, w, b, gamma, beta, eps=1e-5):
    """Pure-JAX reference mirroring the PyTorch forward (training-mode BN)."""
    up = jnp.repeat(jnp.repeat(x, 2, axis=2), 2, axis=3)
    KH, KW = w.shape[2], w.shape[3]
    pad_w = (KH - 1) // 2
    pad_h = (KW - 1) // 2
    xp = jnp.pad(up, ((0, 0), (0, 0), (pad_h, pad_h), (pad_w, pad_w)), mode="reflect")
    y = jax.lax.conv_general_dilated(
        xp, w, window_strides=(1, 1), padding="VALID",
        dimension_numbers=("NCHW", "OIHW", "NCHW"),
        precision=jax.lax.Precision.HIGHEST)
    y = y + b[None, :, None, None]
    y = jnp.maximum(y, 0.0)
    mean = jnp.mean(y, axis=(0, 2, 3), keepdims=True)
    var = jnp.mean(jnp.square(y - mean), axis=(0, 2, 3), keepdims=True)
    return (gamma[None, :, None, None] * (y - mean) * jax.lax.rsqrt(var + eps)
            + beta[None, :, None, None])


if __name__ == "__main__":
    key = jax.random.PRNGKey(0)
    kx, kw = jax.random.split(key)

    # UpsampleBlock(in_size=4, out_size=8, kernel_size=(3, 3))
    N, Cin, H, W = 2, 4, 16, 16
    Cout, KH, KW = 8, 3, 3

    x = jax.random.normal(kx, (N, Cin, H, W), dtype=jnp.float32)

    # init_conv: kaiming_normal_(a=4.4, nonlinearity='relu') -> gain = sqrt(2)
    # (the `a` parameter is ignored for 'relu'); fan_in = Cin*KH*KW; bias = 0.
    fan_in = Cin * KH * KW
    std = float(np.sqrt(2.0) / np.sqrt(fan_in))
    w = jax.random.normal(kw, (Cout, Cin, KH, KW), dtype=jnp.float32) * std
    b = jnp.zeros((Cout,), jnp.float32)
    # init_bn: weight = 0.1, bias default 0.
    gamma = jnp.full((Cout,), 0.1, dtype=jnp.float32)
    beta = jnp.zeros((Cout,), jnp.float32)

    fwd = jax.jit(upsample_block_forward)
    out = jax.block_until_ready(fwd(x, w, b, gamma, beta))
    assert out.shape == (N, Cout, 2 * H, 2 * W), out.shape

    ref = jax.block_until_ready(reference_forward(x, w, b, gamma, beta))
    np.testing.assert_allclose(np.asarray(out), np.asarray(ref), rtol=5e-4, atol=5e-4)

    print("KERNEL_OK")
</pallas_src>

<mosaic_0001>
module attributes {stable_mosaic.version = 11 : i64} {
  func.func @fused_kernel(%arg0: i32, %arg1: memref<36x2048xf32, #tpu.memory_space<vmem>>, %arg2: memref<8x36xf32, #tpu.memory_space<vmem>>, %arg3: memref<8x1xf32, #tpu.memory_space<vmem>>, %arg4: memref<8x1xf32, #tpu.memory_space<vmem>>, %arg5: memref<8x1xf32, #tpu.memory_space<vmem>>, %arg6: memref<8x2048xf32, #tpu.memory_space<vmem>>) attributes {dimension_semantics = [#tpu.dimension_semantics<arbitrary>], iteration_bounds = array<i64: 1>, scalar_prefetch = 0 : i64, scratch_operands = 0 : i64, tpu.core_type = #tpu.core_type<tc>, window_params = [{pipeline_mode = #tpu.pipeline_mode<synchronous>, transform_indices = @transform_0, window_bounds = array<i64: 36, 2048>}, {pipeline_mode = #tpu.pipeline_mode<synchronous>, transform_indices = @transform_1, window_bounds = array<i64: 8, 36>}, {pipeline_mode = #tpu.pipeline_mode<synchronous>, transform_indices = @transform_2, window_bounds = array<i64: 8, 1>}, {pipeline_mode = #tpu.pipeline_mode<synchronous>, transform_indices = @transform_3, window_bounds = array<i64: 8, 1>}, {pipeline_mode = #tpu.pipeline_mode<synchronous>, transform_indices = @transform_4, window_bounds = array<i64: 8, 1>}, {pipeline_mode = #tpu.pipeline_mode<synchronous>, transform_indices = @transform_5, window_bounds = array<i64: 8, 2048>}]} {
    %c0 = arith.constant 0 : index
    %c0_0 = arith.constant 0 : index
    %0 = vector.load %arg2[%c0, %c0_0] : memref<8x36xf32, #tpu.memory_space<vmem>>, vector<8x36xf32>
    %c0_1 = arith.constant 0 : index
    %c0_2 = arith.constant 0 : index
    %1 = vector.load %arg1[%c0_1, %c0_2] : memref<36x2048xf32, #tpu.memory_space<vmem>>, vector<36x2048xf32>
    %cst = arith.constant dense<0.000000e+00> : vector<8x2048xf32>
    %2 = tpu.matmul %0, %1, %cst {dimension_numbers = #tpu.dot_dimension_numbers<[1], [0], [0], [1], [0, 0, 1, 1], [], []>} : vector<8x36xf32>, vector<36x2048xf32>, vector<8x2048xf32> -> vector<8x2048xf32>
    %c0_3 = arith.constant 0 : index
    %c0_4 = arith.constant 0 : index
    %3 = vector.load %arg3[%c0_3, %c0_4] : memref<8x1xf32, #tpu.memory_space<vmem>>, vector<8x1xf32>
    %4 = vector.broadcast %3 : vector<8x1xf32> to vector<8x2048xf32>
    %5 = arith.addf %2, %4 : vector<8x2048xf32>
    %cst_5 = arith.constant 0.000000e+00 : f32
    %6 = vector.broadcast %cst_5 : f32 to vector<8x2048xf32>
    %7 = arith.maximumf %5, %6 : vector<8x2048xf32>
    %cst_6 = arith.constant dense<0.000000e+00> : vector<8xf32>
    %8 = vector.multi_reduction <add>, %7, %cst_6 [1] : vector<8x2048xf32> to vector<8xf32>
    %9 = vector.shape_cast %8 : vector<8xf32> to vector<8x1xf32>
    %cst_7 = arith.constant 4.8828125E-4 : f32
    %10 = vector.broadcast %cst_7 : f32 to vector<8x1xf32>
    %11 = arith.mulf %9, %10 : vector<8x1xf32>
    %12 = vector.broadcast %11 : vector<8x1xf32> to vector<8x2048xf32>
    %13 = arith.subf %7, %12 : vector<8x2048xf32>
    %14 = arith.mulf %13, %13 : vector<8x2048xf32>
    %cst_8 = arith.constant dense<0.000000e+00> : vector<8xf32>
    %15 = vector.multi_reduction <add>, %14, %cst_8 [1] : vector<8x2048xf32> to vector<8xf32>
    %16 = vector.shape_cast %15 : vector<8xf32> to vector<8x1xf32>
    %cst_9 = arith.constant 4.8828125E-4 : f32
    %17 = vector.broadcast %cst_9 : f32 to vector<8x1xf32>
    %18 = arith.mulf %16, %17 : vector<8x1xf32>
    %c0_10 = arith.constant 0 : index
    %c0_11 = arith.constant 0 : index
    %19 = vector.load %arg4[%c0_10, %c0_11] : memref<8x1xf32, #tpu.memory_space<vmem>>, vector<8x1xf32>
    %cst_12 = arith.constant 9.99999974E-6 : f32
    %20 = vector.broadcast %cst_12 : f32 to vector<8x1xf32>
    %21 = arith.addf %18, %20 : vector<8x1xf32>
    %22 = math.rsqrt %21 : vector<8x1xf32>
    %23 = arith.mulf %19, %22 : vector<8x1xf32>
    %24 = vector.broadcast %23 : vector<8x1xf32> to vector<8x2048xf32>
    %25 = arith.mulf %13, %24 : vector<8x2048xf32>
    %c0_13 = arith.constant 0 : index
    %c0_14 = arith.constant 0 : index
    %26 = vector.load %arg5[%c0_13, %c0_14] : memref<8x1xf32, #tpu.memory_space<vmem>>, vector<8x1xf32>
    %27 = vector.broadcast %26 : vector<8x1xf32> to vector<8x2048xf32>
    %28 = arith.addf %25, %27 : vector<8x2048xf32>
    %c0_15 = arith.constant 0 : index
    %c0_16 = arith.constant 0 : index
    %29 = vector.load %arg6[%c0_15, %c0_16] : memref<8x2048xf32, #tpu.memory_space<vmem>>, vector<8x2048xf32>
    tpu.vector_store %arg6[%c0_15, %c0_16], %28 {strides = array<i32>} : memref<8x2048xf32, #tpu.memory_space<vmem>>, vector<8x2048xf32>,
    return
  }
  func.func @transform_0(%arg0: i32) -> (i32, i32) {
    %c0_i32 = arith.constant 0 : i32
    %c0_i32_0 = arith.constant 0 : i32
    %c0_i32_1 = arith.constant 0 : i32
    return %c0_i32, %c0_i32_0 : i32, i32
  }
  func.func @transform_1(%arg0: i32) -> (i32, i32) {
    %c0_i32 = arith.constant 0 : i32
    %c0_i32_0 = arith.constant 0 : i32
    %c0_i32_1 = arith.constant 0 : i32
    return %c0_i32, %c0_i32_0 : i32, i32
  }
  func.func @transform_2(%arg0: i32) -> (i32, i32) {
    %c0_i32 = arith.constant 0 : i32
    %c0_i32_0 = arith.constant 0 : i32
    %c0_i32_1 = arith.constant 0 : i32
    return %c0_i32, %c0_i32_0 : i32, i32
  }
  func.func @transform_3(%arg0: i32) -> (i32, i32) {
    %c0_i32 = arith.constant 0 : i32
    %c0_i32_0 = arith.constant 0 : i32
    %c0_i32_1 = arith.constant 0 : i32
    return %c0_i32, %c0_i32_0 : i32, i32
  }
  func.func @transform_4(%arg0: i32) -> (i32, i32) {
    %c0_i32 = arith.constant 0 : i32
    %c0_i32_0 = arith.constant 0 : i32
    %c0_i32_1 = arith.constant 0 : i32
    return %c0_i32, %c0_i32_0 : i32, i32
  }
  func.func @transform_5(%arg0: i32) -> (i32, i32) {
    %c0_i32 = arith.constant 0 : i32
    %c0_i32_0 = arith.constant 0 : i32
    %c0_i32_1 = arith.constant 0 : i32
    return %c0_i32, %c0_i32_0 : i32, i32
  }
}

</mosaic_0001>

<llo_original>
// kernel: upsample_block_forward.1
$region0: #{upsample_block_forward.1}
  #allocation0 [shape = 'u32[]', space=smem, size = 0x4, offset = 0x4, fixed_abs, tag = 'smem constant byte address 0x4 - core index']
  #allocation1 [shape = 'u32[144,128]{1,0:T(1,128)}', space=vmem, size = 0x12000, scoped, tag = 'internal scratch']
  %s0 = inlined_call_operand.vmem [shape: f32[36,2048], index: 0, kind: input, shape index: {}]
  %s1 = inlined_call_operand.vmem [shape: f32[8,36], index: 1, kind: input, shape index: {}]
  %s2 = inlined_call_operand.vmem [shape: f32[8,1], index: 2, kind: input, shape index: {}]
  %s3 = inlined_call_operand.vmem [shape: f32[8,1], index: 3, kind: input, shape index: {}]
  %s4 = inlined_call_operand.vmem [shape: f32[8,1], index: 4, kind: input, shape index: {}]
  %s5 = inlined_call_operand.vmem [shape: f32[8,2048], index: 5, kind: output, shape index: {}]
  %s6 = sld [smem:[#allocation0]]
  $region30: #{upsample_block_forward.1} parent=0
    _
  %s8 = ssub.s32 1, %s6
  %s9 = scalar_select 0, %s8, %s6
  // Predicated region
  $region2: #{upsample_block_forward.1} parent=0 // pred_check
    _
  $region3: #{upsample_block_forward.1} parent=0 // pred_check_branch
    %11 = sbr.rel (0) target = $region5
  $region4: #{upsample_block_forward.1} parent=0 // pred_region
    _
  $region5: #{upsample_block_forward.1} parent=0 // pred_fallthru
    _
  // Predicated region
  $region6: #{upsample_block_forward.1} parent=0 // pred_check
    _
  $region7: #{upsample_block_forward.1} parent=0 // pred_check_branch
    %13 = sbr.rel (0) target = $region9
  $region8: #{upsample_block_forward.1} parent=0 // pred_region
    _
  $region9: #{upsample_block_forward.1} parent=0 // pred_fallthru
    _
  // Predicated region
  $region10: #{upsample_block_forward.1} parent=0 // pred_check
    _
  $region11: #{upsample_block_forward.1} parent=0 // pred_check_branch
    %15 = sbr.rel (0) target = $region13
  $region12: #{upsample_block_forward.1} parent=0 // pred_region
    _
  $region13: #{upsample_block_forward.1} parent=0 // pred_fallthru
    _
  // Predicated region
  $region14: #{upsample_block_forward.1} parent=0 // pred_check
    _
  $region15: #{upsample_block_forward.1} parent=0 // pred_check_branch
    %17 = sbr.rel (0) target = $region17
  $region16: #{upsample_block_forward.1} parent=0 // pred_region
    _
  $region17: #{upsample_block_forward.1} parent=0 // pred_fallthru
    _
  // Predicated region
  $region18: #{upsample_block_forward.1} parent=0 // pred_check
    _
  $region19: #{upsample_block_forward.1} parent=0 // pred_check_branch
    %19 = sbr.rel (0) target = $region21
  $region20: #{upsample_block_forward.1} parent=0 // pred_region
    _
  $region21: #{upsample_block_forward.1} parent=0 // pred_fallthru
    _
  %v20 = vld [vmem:[%s1] sm:$0xff]
  %v21 = vld [vmem:[%s0] sm:$0xff]
  %v22 = vld [vmem:[%s0 + $0x8] sm:$0xff]
  %v23 = vld [vmem:[%s0 + $0x10] sm:$0xff]
  %v24 = vld [vmem:[%s0 + $0x18] sm:$0xff]
  %v25 = vld [vmem:[%s0 + $0x20] sm:$0xff]
  %v26 = vld [vmem:[%s0 + $0x28] sm:$0xff]
  %v27 = vld [vmem:[%s0 + $0x30] sm:$0xff]
  %v28 = vld [vmem:[%s0 + $0x38] sm:$0xff]
  %v29 = vld [vmem:[%s0 + $0x40] sm:$0xff]
  %v30 = vld [vmem:[%s0 + $0x48] sm:$0xff]
  %v31 = vld [vmem:[%s0 + $0x50] sm:$0xff]
  %v32 = vld [vmem:[%s0 + $0x58] sm:$0xff]
  %v33 = vld [vmem:[%s0 + $0x60] sm:$0xff]
  %v34 = vld [vmem:[%s0 + $0x68] sm:$0xff]
  %v35 = vld [vmem:[%s0 + $0x70] sm:$0xff]
  %v36 = vld [vmem:[%s0 + $0x78] sm:$0xff]
  %v37 = vld [vmem:[%s0 + $0x80] sm:$0xff]
  %v38 = vld [vmem:[%s0 + $0x88] sm:$0xff]
  %v39 = vld [vmem:[%s0 + $0x90] sm:$0xff]
  %v40 = vld [vmem:[%s0 + $0x98] sm:$0xff]
  %v41 = vld [vmem:[%s0 + $0xa0] sm:$0xff]
  %v42 = vld [vmem:[%s0 + $0xa8] sm:$0xff]
  %v43 = vld [vmem:[%s0 + $0xb0] sm:$0xff]
  %v44 = vld [vmem:[%s0 + $0xb8] sm:$0xff]
  %v45 = vld [vmem:[%s0 + $0xc0] sm:$0xff]
  %v46 = vld [vmem:[%s0 + $0xc8] sm:$0xff]
  %v47 = vld [vmem:[%s0 + $0xd0] sm:$0xff]
  %v48 = vld [vmem:[%s0 + $0xd8] sm:$0xff]
  %v49 = vld [vmem:[%s0 + $0xe0] sm:$0xff]
  %v50 = vld [vmem:[%s0 + $0xe8] sm:$0xff]
  %v51 = vld [vmem:[%s0 + $0xf0] sm:$0xff]
  %v52 = vld [vmem:[%s0 + $0xf8] sm:$0xff]
  %v53 = vld [vmem:[%s0 + $0x100] sm:$0xff]
  %v54 = vld [vmem:[%s0 + $0x108] sm:$0xff]
  %v55 = vld [vmem:[%s0 + $0x110] sm:$0xff]
  %v56 = vld [vmem:[%s0 + $0x118] sm:$0xff]
  %v57 = vld [vmem:[%s0 + $0x120] sm:$0xff]
  %v58 = vld [vmem:[%s0 + $0x128] sm:$0xff]
  %v59 = vld [vmem:[%s0 + $0x130] sm:$0xff]
  %v60 = vld [vmem:[%s0 + $0x138] sm:$0xff]
  %v61 = vld [vmem:[%s0 + $0x140] sm:$0xff]
  %v62 = vld [vmem:[%s0 + $0x148] sm:$0xff]
  %v63 = vld [vmem:[%s0 + $0x150] sm:$0xff]
  %v64 = vld [vmem:[%s0 + $0x158] sm:$0xff]
  %v65 = vld [vmem:[%s0 + $0x160] sm:$0xff]
  %v66 = vld [vmem:[%s0 + $0x168] sm:$0xff]
  %v67 = vld [vmem:[%s0 + $0x170] sm:$0xff]
  %v68 = vld [vmem:[%s0 + $0x178] sm:$0xff]
  %v69 = vld [vmem:[%s0 + $0x180] sm:$0xff]
  %v70 = vld [vmem:[%s0 + $0x188] sm:$0xff]
  %v71 = vld [vmem:[%s0 + $0x190] sm:$0xff]
  %v72 = vld [vmem:[%s0 + $0x198] sm:$0xff]
  %v73 = vld [vmem:[%s0 + $0x1a0] sm:$0xff]
  %v74 = vld [vmem:[%s0 + $0x1a8] sm:$0xff]
  %v75 = vld [vmem:[%s0 + $0x1b0] sm:$0xff]
  %v76 = vld [vmem:[%s0 + $0x1b8] sm:$0xff]
  %v77 = vld [vmem:[%s0 + $0x1c0] sm:$0xff]
  %v78 = vld [vmem:[%s0 + $0x1c8] sm:$0xff]
  %v79 = vld [vmem:[%s0 + $0x1d0] sm:$0xff]
  %v80 = vld [vmem:[%s0 + $0x1d8] sm:$0xff]
  %v81 = vld [vmem:[%s0 + $0x1e0] sm:$0xff]
  %v82 = vld [vmem:[%s0 + $0x1e8] sm:$0xff]
  %v83 = vld [vmem:[%s0 + $0x1f0] sm:$0xff]
  %v84 = vld [vmem:[%s0 + $0x1f8] sm:$0xff]
  %v85 = vld [vmem:[%s0 + $0x200] sm:$0xf]
  %v86 = vld [vmem:[%s0 + $0x208] sm:$0xf]
  %v87 = vld [vmem:[%s0 + $0x210] sm:$0xf]
  %v88 = vld [vmem:[%s0 + $0x218] sm:$0xf]
  %v89 = vld [vmem:[%s0 + $0x220] sm:$0xf]
  %v90 = vld [vmem:[%s0 + $0x228] sm:$0xf]
  %v91 = vld [vmem:[%s0 + $0x230] sm:$0xf]
  %v92 = vld [vmem:[%s0 + $0x238] sm:$0xf]
  %v93 = vld [vmem:[%s0 + $0x240] sm:$0xf]
  %v94 = vld [vmem:[%s0 + $0x248] sm:$0xf]
  %v95 = vld [vmem:[%s0 + $0x250] sm:$0xf]
  %v96 = vld [vmem:[%s0 + $0x258] sm:$0xf]
  %v97 = vld [vmem:[%s0 + $0x260] sm:$0xf]
  %v98 = vld [vmem:[%s0 + $0x268] sm:$0xf]
  %v99 = vld [vmem:[%s0 + $0x270] sm:$0xf]
  %v100 = vld [vmem:[%s0 + $0x278] sm:$0xf]
  %v101 = vld [vmem:[%s2] sm:$0xff]
  %103 = vset.pattern.permute.xlu0 0
  %104 = vperm.xlu0 %103, %v101
  %v105 = vpop.permute.xlu0 %104
  %vm107 = vcmask 293888
  %v109 = vsel %vm107, %v20, 0
  %vm111 = vcmask 1043456
  %v113 = vsel %vm111, %v85, 0
  %v116 = vsel %vm111, %v86, 0
  %v119 = vsel %vm111, %v87, 0
  %v122 = vsel %vm111, %v88, 0
  %v125 = vsel %vm111, %v89, 0
  %v128 = vsel %vm111, %v90, 0
  %v131 = vsel %vm111, %v91, 0
  %v134 = vsel %vm111, %v92, 0
  %v137 = vsel %vm111, %v93, 0
  %v140 = vsel %vm111, %v94, 0
  %v143 = vsel %vm111, %v95, 0
  %v146 = vsel %vm111, %v96, 0
  %v149 = vsel %vm111, %v97, 0
  %v152 = vsel %vm111, %v98, 0
  %v155 = vsel %vm111, %v99, 0
  %v158 = vsel %vm111, %v100, 0
  %160 = vmatprep.subr.mxu0 %v22
  %161 = vmatpush1.msra.mxu0 %v21
  %162 = vmatprep.subr.mxu0 %v38
  %163 = vmatpush1.msra.mxu0 %v37
  %164 = vmatprep.subr.mxu0 %v54
  %165 = vmatpush1.msra.mxu0 %v53
  %166 = vmatprep.subr.mxu0 %v70
  %167 = vmatpush1.msra.mxu0 %v69
  %168 = vmatprep.subr.mxu0 %v116
  %169 = vmatpush1.msra.mxu0 %v113
  %170 = vmatprep.subr.mxu0 0.0
  %171 = vmatpush1.msra.mxu0 0.0
  %172 = vmatprep.subr.mxu0 0.0
  %173 = vmatpush1.msra.mxu0 0.0
  %174 = vmatprep.subr.mxu0 0.0
  %175 = vmatpush1.msra.mxu0 0.0
  %176 = vmatprep.subr.mxu0 0.0
  %177 = vmatpush1.msra.mxu0 0.0
  %178 = vmatprep.subr.mxu0 0.0
  %179 = vmatpush1.msra.mxu0 0.0
  %180 = vmatprep.subr.mxu0 0.0
  %181 = vmatpush1.msra.mxu0 0.0
  %182 = vmatprep.subr.mxu0 0.0
  %183 = vmatpush1.msra.mxu0 0.0
  %184 = vmatprep.subr.mxu0 0.0
  %185 = vmatpush1.msra.mxu0 0.0
  %186 = vmatprep.subr.mxu0 0.0
  %187 = vmatpush1.msra.mxu0 0.0
  %188 = vmatprep.subr.mxu0 0.0
  %189 = vmatpush1.msra.mxu0 0.0
  %190 = vmatprep.subr.mxu0 0.0
  %191 = vmatpush1.msra.mxu0 0.0
  %192 = vmatprep.subr.mxu0 0.0
  %193 = vmatpush1.msra.mxu0 0.0
  %194 = vmatprep.subr.mxu0 0.0
  %195 = vmatpush1.msra.mxu0 0.0
  %196 = vmatprep.subr.mxu0 0.0
  %197 = vmatpush1.msra.mxu0 0.0
  %198 = vmatprep.subr.mxu0 0.0
  %199 = vmatpush1.msra.mxu0 0.0
  %200 = vmatprep.subr.mxu0 0.0
  %201 = vmatpush1.msra.mxu0 0.0
  %202 = vmatprep.subr.mxu0 0.0
  %203 = vmatpush1.msra.mxu0 0.0
  %204 = vmatprep.subr.mxu0 0.0
  %205 = vmatpush1.msra.mxu0 0.0
  %206 = vmatprep.subr.mxu0 0.0
  %207 = vmatpush1.msra.mxu0 0.0
  %208 = vmatprep.subr.mxu0 0.0
  %209 = vmatpush1.msra.mxu0 0.0
  %210 = vmatprep.subr.mxu0 0.0
  %211 = vmatpush1.msra.mxu0 0.0
  %212 = vmatprep.subr.mxu0 0.0
  %213 = vmatpush1.msra.mxu0 0.0
  %214 = vmatprep.subr.mxu0 0.0
  %215 = vmatpush1.msra.mxu0 0.0
  %216 = vmatprep.subr.mxu0 0.0
  %217 = vmatpush1.msra.mxu0 0.0
  %218 = vmatprep.subr.mxu0 0.0
  %219 = vmatpush1.msra.mxu0 0.0
  %220 = vmatprep.subr.mxu0 0.0
  %221 = vmatpush1.msra.mxu0 0.0
  %222 = vmatprep.subr.mxu0 0.0
  %223 = vmatpush1.msra.mxu0 0.0
  %224 = vmatprep.mubr.f32.mxu0 0.0
  %225 = vmatmul.mubr.f32.gmra.mrb[0].mxu0 %v109
  %v226 = vpop.f32.mrb[0].mxu0
  %v227 = vadd.f32 %v105, %v226
  %v228 = vpop.f32.mrb[0].mxu0
  %v229 = vadd.f32 %v105, %v228
  %230 = vdwg.mxu0
  %231 = vmatprep.subr.mxu0 %v24
  %232 = vmatpush1.msra.mxu0 %v23
  %233 = vmatprep.subr.mxu0 %v40
  %234 = vmatpush1.msra.mxu0 %v39
  %235 = vmatprep.subr.mxu0 %v56
  %236 = vmatpush1.msra.mxu0 %v55
  %237 = vmatprep.subr.mxu0 %v72
  %238 = vmatpush1.msra.mxu0 %v71
  %239 = vmatprep.subr.mxu0 %v122
  %240 = vmatpush1.msra.mxu0 %v119
  %241 = vmatprep.subr.mxu0 0.0
  %242 = vmatpush1.msra.mxu0 0.0
  %243 = vmatprep.subr.mxu0 0.0
  %244 = vmatpush1.msra.mxu0 0.0
  %245 = vmatprep.subr.mxu0 0.0
  %246 = vmatpush1.msra.mxu0 0.0
  %247 = vmatprep.subr.mxu0 0.0
  %248 = vmatpush1.msra.mxu0 0.0
  %249 = vmatprep.subr.mxu0 0.0
  %250 = vmatpush1.msra.mxu0 0.0
  %251 = vmatprep.subr.mxu0 0.0
  %252 = vmatpush1.msra.mxu0 0.0
  %253 = vmatprep.subr.mxu0 0.0
  %254 = vmatpush1.msra.mxu0 0.0
  %255 = vmatprep.subr.mxu0 0.0
  %256 = vmatpush1.msra.mxu0 0.0
  %257 = vmatprep.subr.mxu0 0.0
  %258 = vmatpush1.msra.mxu0 0.0
  %259 = vmatprep.subr.mxu0 0.0
  %260 = vmatpush1.msra.mxu0 0.0
  %261 = vmatprep.subr.mxu0 0.0
  %262 = vmatpush1.msra.mxu0 0.0
  %263 = vmatprep.subr.mxu0 0.0
  %264 = vmatpush1.msra.mxu0 0.0
  %265 = vmatprep.subr.mxu0 0.0
  %266 = vmatpush1.msra.mxu0 0.0
  %267 = vmatprep.subr.mxu0 0.0
  %268 = vmatpush1.msra.mxu0 0.0
  %269 = vmatprep.subr.mxu0 0.0
  %270 = vmatpush1.msra.mxu0 0.0
  %271 = vmatprep.subr.mxu0 0.0
  %272 = vmatpush1.msra.mxu0 0.0
  %273 = vmatprep.subr.mxu0 0.0
  %274 = vmatpush1.msra.mxu0 0.0
  %275 = vmatprep.subr.mxu0 0.0
  %276 = vmatpush1.msra.mxu0 0.0
  %277 = vmatprep.subr.mxu0 0.0
  %278 = vmatpush1.msra.mxu0 0.0
  %279 = vmatprep.subr.mxu0 0.0
  %280 = vmatpush1.msra.mxu0 0.0
  %281 = vmatprep.subr.mxu0 0.0
  %282 = vmatpush1.msra.mxu0 0.0
  %283 = vmatprep.subr.mxu0 0.0
  %284 = vmatpush1.msra.mxu0 0.0
  %285 = vmatprep.subr.mxu0 0.0
  %286 = vmatpush1.msra.mxu0 0.0
  %287 = vmatprep.subr.mxu0 0.0
  %288 = vmatpush1.msra.mxu0 0.0
  %289 = vmatprep.subr.mxu0 0.0
  %290 = vmatpush1.msra.mxu0 0.0
  %291 = vmatprep.subr.mxu0 0.0
  %292 = vmatpush1.msra.mxu0 0.0
  %293 = vmatprep.subr.mxu0 0.0
  %294 = vmatpush1.msra.mxu0 0.0
  %295 = vmatprep.mubr.f32.mxu0 0.0
  %296 = vmatmul.mubr.f32.gmra.mrb[0].mxu0 %v109
  %v297 = vpop.f32.mrb[0].mxu0
  %v298 = vadd.f32 %v105, %v297
  %v299 = vpop.f32.mrb[0].mxu0
  %v300 = vadd.f32 %v105, %v299
  %301 = vdwg.mxu0
  %302 = vmatprep.subr.mxu0 %v26
  %303 = vmatpush1.msra.mxu0 %v25
  %304 = vmatprep.subr.mxu0 %v42
  %305 = vmatpush1.msra.mxu0 %v41
  %306 = vmatprep.subr.mxu0 %v58
  %307 = vmatpush1.msra.mxu0 %v57
  %308 = vmatprep.subr.mxu0 %v74
  %309 = vmatpush1.msra.mxu0 %v73
  %310 = vmatprep.subr.mxu0 %v128
  %311 = vmatpush1.msra.mxu0 %v125
  %312 = vmatprep.subr.mxu0 0.0
  %313 = vmatpush1.msra.mxu0 0.0
  %314 = vmatprep.subr.mxu0 0.0
  %315 = vmatpush1.msra.mxu0 0.0
  %316 = vmatprep.subr.mxu0 0.0
  %317 = vmatpush1.msra.mxu0 0.0
  %318 = vmatprep.subr.mxu0 0.0
  %319 = vmatpush1.msra.mxu0 0.0
  %320 = vmatprep.subr.mxu0 0.0
  %321 = vmatpush1.msra.mxu0 0.0
  %322 = vmatprep.subr.mxu0 0.0
  %323 = vmatpush1.msra.mxu0 0.0
  %324 = vmatprep.subr.mxu0 0.0
  %325 = vmatpush1.msra.mxu0 0.0
  %326 = vmatprep.subr.mxu0 0.0
  %327 = vmatpush1.msra.mxu0 0.0
  %328 = vmatprep.subr.mxu0 0.0
  %329 = vmatpush1.msra.mxu0 0.0
  %330 = vmatprep.subr.mxu0 0.0
  %331 = vmatpush1.msra.mxu0 0.0
  %332 = vmatprep.subr.mxu0 0.0
  %333 = vmatpush1.msra.mxu0 0.0
  %334 = vmatprep.subr.mxu0 0.0
  %335 = vmatpush1.msra.mxu0 0.0
  %336 = vmatprep.subr.mxu0 0.0
  %337 = vmatpush1.msra.mxu0 0.0
  %338 = vmatprep.subr.mxu0 0.0
  %339 = vmatpush1.msra.mxu0 0.0
  %340 = vmatprep.subr.mxu0 0.0
  %341 = vmatpush1.msra.mxu0 0.0
  %342 = vmatprep.subr.mxu0 0.0
  %343 = vmatpush1.msra.mxu0 0.0
  %344 = vmatprep.subr.mxu0 0.0
  %345 = vmatpush1.msra.mxu0 0.0
  %346 = vmatprep.subr.mxu0 0.0
  %347 = vmatpush1.msra.mxu0 0.0
  %348 = vmatprep.subr.mxu0 0.0
  %349 = vmatpush1.msra.mxu0 0.0
  %350 = vmatprep.subr.mxu0 0.0
  %351 = vmatpush1.msra.mxu0 0.0
  %352 = vmatprep.subr.mxu0 0.0
  %353 = vmatpush1.msra.mxu0 0.0
  %354 = vmatprep.subr.mxu0 0.0
  %355 = vmatpush1.msra.mxu0 0.0
  %356 = vmatprep.subr.mxu0 0.0
  %357 = vmatpush1.msra.mxu0 0.0
  %358 = vmatprep.subr.mxu0 0.0
  %359 = vmatpush1.msra.mxu0 0.0
  %360 = vmatprep.subr.mxu0 0.0
  %361 = vmatpush1.msra.mxu0 0.0
  %362 = vmatprep.subr.mxu0 0.0
  %363 = vmatpush1.msra.mxu0 0.0
  %364 = vmatprep.subr.mxu0 0.0
  %365 = vmatpush1.msra.mxu0 0.0
  %366 = vmatprep.mubr.f32.mxu0 0.0
  %367 = vmatmul.mubr.f32.gmra.mrb[0].mxu0 %v109
  %v368 = vpop.f32.mrb[0].mxu0
  %v369 = vadd.f32 %v105, %v368
  %v370 = vpop.f32.mrb[0].mxu0
  %v371 = vadd.f32 %v105, %v370
  %372 = vdwg.mxu0
  %373 = vmatprep.subr.mxu0 %v28
  %374 = vmatpush1.msra.mxu0 %v27
  %375 = vmatprep.subr.mxu0 %v44
  %376 = vmatpush1.msra.mxu0 %v43
  %377 = vmatprep.subr.mxu0 %v60
  %378 = vmatpush1.msra.mxu0 %v59
  %379 = vmatprep.subr.mxu0 %v76
  %380 = vmatpush1.msra.mxu0 %v75
  %381 = vmatprep.subr.mxu0 %v134
  %382 = vmatpush1.msra.mxu0 %v131
  %383 = vmatprep.subr.mxu0 0.0
  %384 = vmatpush1.msra.mxu0 0.0
  %385 = vmatprep.subr.mxu0 0.0
  %386 = vmatpush1.msra.mxu0 0.0
  %387 = vmatprep.subr.mxu0 0.0
  %388 = vmatpush1.msra.mxu0 0.0
  %389 = vmatprep.subr.mxu0 0.0
  %390 = vmatpush1.msra.mxu0 0.0
  %391 = vmatprep.subr.mxu0 0.0
  %392 = vmatpush1.msra.mxu0 0.0
  %393 = vmatprep.subr.mxu0 0.0
  %394 = vmatpush1.msra.mxu0 0.0
  %395 = vmatprep.subr.mxu0 0.0
  %396 = vmatpush1.msra.mxu0 0.0
  %397 = vmatprep.subr.mxu0 0.0
  %398 = vmatpush1.msra.mxu0 0.0
  %399 = vmatprep.subr.mxu0 0.0
  %400 = vmatpush1.msra.mxu0 0.0
  %401 = vmatprep.subr.mxu0 0.0
  %402 = vmatpush1.msra.mxu0 0.0
  %403 = vmatprep.subr.mxu0 0.0
  %404 = vmatpush1.msra.mxu0 0.0
  %405 = vmatprep.subr.mxu0 0.0
  %406 = vmatpush1.msra.mxu0 0.0
  %407 = vmatprep.subr.mxu0 0.0
  %408 = vmatpush1.msra.mxu0 0.0
  %409 = vmatprep.subr.mxu0 0.0
  %410 = vmatpush1.msra.mxu0 0.0
  %411 = vmatprep.subr.mxu0 0.0
  %412 = vmatpush1.msra.mxu0 0.0
  %413 = vmatprep.subr.mxu0 0.0
  %414 = vmatpush1.msra.mxu0 0.0
  %415 = vmatprep.subr.mxu0 0.0
  %416 = vmatpush1.msra.mxu0 0.0
  %417 = vmatprep.subr.mxu0 0.0
  %418 = vmatpush1.msra.mxu0 0.0
  %419 = vmatprep.subr.mxu0 0.0
  %420 = vmatpush1.msra.mxu0 0.0
  %421 = vmatprep.subr.mxu0 0.0
  %422 = vmatpush1.msra.mxu0 0.0
  %423 = vmatprep.subr.mxu0 0.0
  %424 = vmatpush1.msra.mxu0 0.0
  %425 = vmatprep.subr.mxu0 0.0
  %426 = vmatpush1.msra.mxu0 0.0
  %427 = vmatprep.subr.mxu0 0.0
  %428 = vmatpush1.msra.mxu0 0.0
  %429 = vmatprep.subr.mxu0 0.0
  %430 = vmatpush1.msra.mxu0 0.0
  %431 = vmatprep.subr.mxu0 0.0
  %432 = vmatpush1.msra.mxu0 0.0
  %433 = vmatprep.subr.mxu0 0.0
  %434 = vmatpush1.msra.mxu0 0.0
  %435 = vmatprep.subr.mxu0 0.0
  %436 = vmatpush1.msra.mxu0 0.0
  %437 = vmatprep.mubr.f32.mxu0 0.0
  %438 = vmatmul.mubr.f32.gmra.mrb[0].mxu0 %v109
  %v439 = vpop.f32.mrb[0].mxu0
  %v440 = vadd.f32 %v105, %v439
  %v441 = vpop.f32.mrb[0].mxu0
  %v442 = vadd.f32 %v105, %v441
  %443 = vdwg.mxu0
  %444 = vmatprep.subr.mxu0 %v30
  %445 = vmatpush1.msra.mxu0 %v29
  %446 = vmatprep.subr.mxu0 %v46
  %447 = vmatpush1.msra.mxu0 %v45
  %448 = vmatprep.subr.mxu0 %v62
  %449 = vmatpush1.msra.mxu0 %v61
  %450 = vmatprep.subr.mxu0 %v78
  %451 = vmatpush1.msra.mxu0 %v77
  %452 = vmatprep.subr.mxu0 %v140
  %453 = vmatpush1.msra.mxu0 %v137
  %454 = vmatprep.subr.mxu0 0.0
  %455 = vmatpush1.msra.mxu0 0.0
  %456 = vmatprep.subr.mxu0 0.0
  %457 = vmatpush1.msra.mxu0 0.0
  %458 = vmatprep.subr.mxu0 0.0
  %459 = vmatpush1.msra.mxu0 0.0
  %460 = vmatprep.subr.mxu0 0.0
  %461 = vmatpush1.msra.mxu0 0.0
  %462 = vmatprep.subr.mxu0 0.0
  %463 = vmatpush1.msra.mxu0 0.0
  %464 = vmatprep.subr.mxu0 0.0
  %465 = vmatpush1.msra.mxu0 0.0
  %466 = vmatprep.subr.mxu0 0.0
  %467 = vmatpush1.msra.mxu0 0.0
  %468 = vmatprep.subr.mxu0 0.0
  %469 = vmatpush1.msra.mxu0 0.0
  %470 = vmatprep.subr.mxu0 0.0
  %471 = vmatpush1.msra.mxu0 0.0
  %472 = vmatprep.subr.mxu0 0.0
  %473 = vmatpush1.msra.mxu0 0.0
  %474 = vmatprep.subr.mxu0 0.0
  %475 = vmatpush1.msra.mxu0 0.0
  %476 = vmatprep.subr.mxu0 0.0
  %477 = vmatpush1.msra.mxu0 0.0
  %478 = vmatprep.subr.mxu0 0.0
  %479 = vmatpush1.msra.mxu0 0.0
  %480 = vmatprep.subr.mxu0 0.0
  %481 = vmatpush1.msra.mxu0 0.0
  %482 = vmatprep.subr.mxu0 0.0
  %483 = vmatpush1.msra.mxu0 0.0
  %484 = vmatprep.subr.mxu0 0.0
  %485 = vmatpush1.msra.mxu0 0.0
  %486 = vmatprep.subr.mxu0 0.0
  %487 = vmatpush1.msra.mxu0 0.0
  %488 = vmatprep.subr.mxu0 0.0
  %489 = vmatpush1.msra.mxu0 0.0
  %490 = vmatprep.subr.mxu0 0.0
  %491 = vmatpush1.msra.mxu0 0.0
  %492 = vmatprep.subr.mxu0 0.0
  %493 = vmatpush1.msra.mxu0 0.0
  %494 = vmatprep.subr.mxu0 0.0
  %495 = vmatpush1.msra.mxu0 0.0
  %496 = vmatprep.subr.mxu0 0.0
  %497 = vmatpush1.msra.mxu0 0.0
  %498 = vmatprep.subr.mxu0 0.0
  %499 = vmatpush1.msra.mxu0 0.0
  %500 = vmatprep.subr.mxu0 0.0
  %501 = vmatpush1.msra.mxu0 0.0
  %502 = vmatprep.subr.mxu0 0.0
  %503 = vmatpush1.msra.mxu0 0.0
  %504 = vmatprep.subr.mxu0 0.0
  %505 = vmatpush1.msra.mxu0 0.0
  %506 = vmatprep.subr.mxu0 0.0
  %507 = vmatpush1.msra.mxu0 0.0
  %508 = vmatprep.mubr.f32.mxu0 0.0
  %509 = vmatmul.mubr.f32.gmra.mrb[0].mxu0 %v109
  %v510 = vpop.f32.mrb[0].mxu0
  %v511 = vadd.f32 %v105, %v510
  %v512 = vpop.f32.mrb[0].mxu0
  %v513 = vadd.f32 %v105, %v512
  %514 = vdwg.mxu0
  %515 = vmatprep.subr.mxu0 %v32
  %516 = vmatpush1.msra.mxu0 %v31
  %517 = vmatprep.subr.mxu0 %v48
  %518 = vmatpush1.msra.mxu0 %v47
  %519 = vmatprep.subr.mxu0 %v64
  %520 = vmatpush1.msra.mxu0 %v63
  %521 = vmatprep.subr.mxu0 %v80
  %522 = vmatpush1.msra.mxu0 %v79
  %523 = vmatprep.subr.mxu0 %v146
  %524 = vmatpush1.msra.mxu0 %v143
  %525 = vmatprep.subr.mxu0 0.0
  %526 = vmatpush1.msra.mxu0 0.0
  %527 = vmatprep.subr.mxu0 0.0
  %528 = vmatpush1.msra.mxu0 0.0
  %529 = vmatprep.subr.mxu0 0.0
  %530 = vmatpush1.msra.mxu0 0.0
  %531 = vmatprep.subr.mxu0 0.0
  %532 = vmatpush1.msra.mxu0 0.0
  %533 = vmatprep.subr.mxu0 0.0
  %534 = vmatpush1.msra.mxu0 0.0
  %535 = vmatprep.subr.mxu0 0.0
  %536 = vmatpush1.msra.mxu0 0.0
  %537 = vmatprep.subr.mxu0 0.0
  %538 = vmatpush1.msra.mxu0 0.0
  %539 = vmatprep.subr.mxu0 0.0
  %540 = vmatpush1.msra.mxu0 0.0
  %541 = vmatprep.subr.mxu0 0.0
  %542 = vmatpush1.msra.mxu0 0.0
  %543 = vmatprep.subr.mxu0 0.0
  %544 = vmatpush1.msra.mxu0 0.0
  %545 = vmatprep.subr.mxu0 0.0
  %546 = vmatpush1.msra.mxu0 0.0
  %547 = vmatprep.subr.mxu0 0.0
  %548 = vmatpush1.msra.mxu0 0.0
  %549 = vmatprep.subr.mxu0 0.0
  %550 = vmatpush1.msra.mxu0 0.0
  %551 = vmatprep.subr.mxu0 0.0
  %552 = vmatpush1.msra.mxu0 0.0
  %553 = vmatprep.subr.mxu0 0.0
  %554 = vmatpush1.msra.mxu0 0.0
  %555 = vmatprep.subr.mxu0 0.0
  %556 = vmatpush1.msra.mxu0 0.0
  %557 = vmatprep.subr.mxu0 0.0
  %558 = vmatpush1.msra.mxu0 0.0
  %559 = vmatprep.subr.mxu0 0.0
  %560 = vmatpush1.msra.mxu0 0.0
  %561 = vmatprep.subr.mxu0 0.0
  %562 = vmatpush1.msra.mxu0 0.0
  %563 = vmatprep.subr.mxu0 0.0
  %564 = vmatpush1.msra.mxu0 0.0
  %565 = vmatprep.subr.mxu0 0.0
  %566 = vmatpush1.msra.mxu0 0.0
  %567 = vmatprep.subr.mxu0 0.0
  %568 = vmatpush1.msra.mxu0 0.0
  %569 = vmatprep.subr.mxu0 0.0
  %570 = vmatpush1.msra.mxu0 0.0
  %571 = vmatprep.subr.mxu0 0.0
  %572 = vmatpush1.msra.mxu0 0.0
  %573 = vmatprep.subr.mxu0 0.0
  %574 = vmatpush1.msra.mxu0 0.0
  %575 = vmatprep.subr.mxu0 0.0
  %576 = vmatpush1.msra.mxu0 0.0
  %577 = vmatprep.subr.mxu0 0.0
  %578 = vmatpush1.msra.mxu0 0.0
  %579 = vmatprep.mubr.f32.mxu0 0.0
  %580 = vmatmul.mubr.f32.gmra.mrb[0].mxu0 %v109
  %v581 = vpop.f32.mrb[0].mxu0
  %v582 = vadd.f32 %v105, %v581
  %v583 = vpop.f32.mrb[0].mxu0
  %v584 = vadd.f32 %v105, %v583
  %585 = vdwg.mxu0
  %586 = vmatprep.subr.mxu0 %v34
  %587 = vmatpush1.msra.mxu0 %v33
  %588 = vmatprep.subr.mxu0 %v50
  %589 = vmatpush1.msra.mxu0 %v49
  %590 = vmatprep.subr.mxu0 %v66
  %591 = vmatpush1.msra.mxu0 %v65
  %592 = vmatprep.subr.mxu0 %v82
  %593 = vmatpush1.msra.mxu0 %v81
  %594 = vmatprep.subr.mxu0 %v152
  %595 = vmatpush1.msra.mxu0 %v149
  %596 = vmatprep.subr.mxu0 0.0
  %597 = vmatpush1.msra.mxu0 0.0
  %598 = vmatprep.subr.mxu0 0.0
  %599 = vmatpush1.msra.mxu0 0.0
  %600 = vmatprep.subr.mxu0 0.0
  %601 = vmatpush1.msra.mxu0 0.0
  %602 = vmatprep.subr.mxu0 0.0
  %603 = vmatpush1.msra.mxu0 0.0
  %604 = vmatprep.subr.mxu0 0.0
  %605 = vmatpush1.msra.mxu0 0.0
  %606 = vmatprep.subr.mxu0 0.0
  %607 = vmatpush1.msra.mxu0 0.0
  %608 = vmatprep.subr.mxu0 0.0
  %609 = vmatpush1.msra.mxu0 0.0
  %610 = vmatprep.subr.mxu0 0.0
  %611 = vmatpush1.msra.mxu0 0.0
  %612 = vmatprep.subr.mxu0 0.0
  %613 = vmatpush1.msra.mxu0 0.0
  %614 = vmatprep.subr.mxu0 0.0
  %615 = vmatpush1.msra.mxu0 0.0
  %616 = vmatprep.subr.mxu0 0.0
  %617 = vmatpush1.msra.mxu0 0.0
  %618 = vmatprep.subr.mxu0 0.0
  %619 = vmatpush1.msra.mxu0 0.0
  %620 = vmatprep.subr.mxu0 0.0
  %621 = vmatpush1.msra.mxu0 0.0
  %622 = vmatprep.subr.mxu0 0.0
  %623 = vmatpush1.msra.mxu0 0.0
  %624 = vmatprep.subr.mxu0 0.0
  %625 = vmatpush1.msra.mxu0 0.0
  %626 = vmatprep.subr.mxu0 0.0
  %627 = vmatpush1.msra.mxu0 0.0
  %628 = vmatprep.subr.mxu0 0.0
  %629 = vmatpush1.msra.mxu0 0.0
  %630 = vmatprep.subr.mxu0 0.0
  %631 = vmatpush1.msra.mxu0 0.0
  %632 = vmatprep.subr.mxu0 0.0
  %633 = vmatpush1.msra.mxu0 0.0
  %634 = vmatprep.subr.mxu0 0.0
  %635 = vmatpush1.msra.mxu0 0.0
  %636 = vmatprep.subr.mxu0 0.0
  %637 = vmatpush1.msra.mxu0 0.0
  %638 = vmatprep.subr.mxu0 0.0
  %639 = vmatpush1.msra.mxu0 0.0
  %640 = vmatprep.subr.mxu0 0.0
  %641 = vmatpush1.msra.mxu0 0.0
  %642 = vmatprep.subr.mxu0 0.0
  %643 = vmatpush1.msra.mxu0 0.0
  %644 = vmatprep.subr.mxu0 0.0
  %645 = vmatpush1.msra.mxu0 0.0
  %646 = vmatprep.subr.mxu0 0.0
  %647 = vmatpush1.msra.mxu0 0.0
  %648 = vmatprep.subr.mxu0 0.0
  %649 = vmatpush1.msra.mxu0 0.0
  %650 = vmatprep.mubr.f32.mxu0 0.0
  %651 = vmatmul.mubr.f32.gmra.mrb[0].mxu0 %v109
  %v652 = vpop.f32.mrb[0].mxu0
  %v653 = vadd.f32 %v105, %v652
  %v654 = vpop.f32.mrb[0].mxu0
  %v655 = vadd.f32 %v105, %v654
  %656 = vdwg.mxu0
  %657 = vmatprep.subr.mxu0 %v36
  %658 = vmatpush1.msra.mxu0 %v35
  %659 = vmatprep.subr.mxu0 %v52
  %660 = vmatpush1.msra.mxu0 %v51
  %661 = vmatprep.subr.mxu0 %v68
  %662 = vmatpush1.msra.mxu0 %v67
  %663 = vmatprep.subr.mxu0 %v84
  %664 = vmatpush1.msra.mxu0 %v83
  %665 = vmatprep.subr.mxu0 %v158
  %666 = vmatpush1.msra.mxu0 %v155
  %667 = vmatprep.subr.mxu0 0.0
  %668 = vmatpush1.msra.mxu0 0.0
  %669 = vmatprep.subr.mxu0 0.0
  %670 = vmatpush1.msra.mxu0 0.0
  %671 = vmatprep.subr.mxu0 0.0
  %672 = vmatpush1.msra.mxu0 0.0
  %673 = vmatprep.subr.mxu0 0.0
  %674 = vmatpush1.msra.mxu0 0.0
  %675 = vmatprep.subr.mxu0 0.0
  %676 = vmatpush1.msra.mxu0 0.0
  %677 = vmatprep.subr.mxu0 0.0
  %678 = vmatpush1.msra.mxu0 0.0
  %679 = vmatprep.subr.mxu0 0.0
  %680 = vmatpush1.msra.mxu0 0.0
  %681 = vmatprep.subr.mxu0 0.0
  %682 = vmatpush1.msra.mxu0 0.0
  %683 = vmatprep.subr.mxu0 0.0
  %684 = vmatpush1.msra.mxu0 0.0
  %685 = vmatprep.subr.mxu0 0.0
  %686 = vmatpush1.msra.mxu0 0.0
  %687 = vmatprep.subr.mxu0 0.0
  %688 = vmatpush1.msra.mxu0 0.0
  %689 = vmatprep.subr.mxu0 0.0
  %690 = vmatpush1.msra.mxu0 0.0
  %691 = vmatprep.subr.mxu0 0.0
  %692 = vmatpush1.msra.mxu0 0.0
  %693 = vmatprep.subr.mxu0 0.0
  %694 = vmatpush1.msra.mxu0 0.0
  %695 = vmatprep.subr.mxu0 0.0
  %696 = vmatpush1.msra.mxu0 0.0
  %697 = vmatprep.subr.mxu0 0.0
  %698 = vmatpush1.msra.mxu0 0.0
  %699 = vmatprep.subr.mxu0 0.0
  %700 = vmatpush1.msra.mxu0 0.0
  %701 = vmatprep.subr.mxu0 0.0
  %702 = vmatpush1.msra.mxu0 0.0
  %703 = vmatprep.subr.mxu0 0.0
  %704 = vmatpush1.msra.mxu0 0.0
  %705 = vmatprep.subr.mxu0 0.0
  %706 = vmatpush1.msra.mxu0 0.0
  %707 = vmatprep.subr.mxu0 0.0
  %708 = vmatpush1.msra.mxu0 0.0
  %709 = vmatprep.subr.mxu0 0.0
  %710 = vmatpush1.msra.mxu0 0.0
  %711 = vmatprep.subr.mxu0 0.0
  %712 = vmatpush1.msra.mxu0 0.0
  %713 = vmatprep.subr.mxu0 0.0
  %714 = vmatpush1.msra.mxu0 0.0
  %715 = vmatprep.subr.mxu0 0.0
  %716 = vmatpush1.msra.mxu0 0.0
  %717 = vmatprep.subr.mxu0 0.0
  %718 = vmatpush1.msra.mxu0 0.0
  %719 = vmatprep.subr.mxu0 0.0
  %720 = vmatpush1.msra.mxu0 0.0
  %721 = vmatprep.mubr.f32.mxu0 0.0
  %722 = vmatmul.mubr.f32.gmra.mrb[0].mxu0 %v109
  %v723 = vpop.f32.mrb[0].mxu0
  %v724 = vadd.f32 %v105, %v723
  %v725 = vpop.f32.mrb[0].mxu0
  %v726 = vadd.f32 %v105, %v725
  %727 = vdwg.mxu0
  %v728 = vmax.f32 %v227, 0.0
  %v729 = vmax.f32 %v229, 0.0
  %v730 = vmax.f32 %v298, 0.0
  %v731 = vmax.f32 %v300, 0.0
  %v732 = vmax.f32 %v369, 0.0
  %v733 = vmax.f32 %v371, 0.0
  %v734 = vmax.f32 %v440, 0.0
  %v735 = vmax.f32 %v442, 0.0
  %v736 = vmax.f32 %v511, 0.0
  %v737 = vmax.f32 %v513, 0.0
  %v738 = vmax.f32 %v582, 0.0
  %v739 = vmax.f32 %v584, 0.0
  %v740 = vmax.f32 %v653, 0.0
  %v741 = vmax.f32 %v655, 0.0
  %v742 = vmax.f32 %v724, 0.0
  %v743 = vmax.f32 %v726, 0.0
  %v744 = vadd.f32 %v728, %v729
  %v745 = vadd.f32 %v744, %v730
  %v746 = vadd.f32 %v745, %v731
  %v747 = vadd.f32 %v746, %v732
  %v748 = vadd.f32 %v747, %v733
  %v749 = vadd.f32 %v748, %v734
  %v750 = vadd.f32 %v749, %v735
  %v751 = vadd.f32 %v750, %v736
  %v752 = vadd.f32 %v751, %v737
  %v753 = vadd.f32 %v752, %v738
  %v754 = vadd.f32 %v753, %v739
  %v755 = vadd.f32 %v754, %v740
  %v756 = vadd.f32 %v755, %v741
  %v757 = vadd.f32 %v756, %v742
  %v758 = vadd.f32 %v757, %v743
  %759 = vadd.xlane.f32.xlu0 %v758
  %v760 = vpop.xlane.xlu0 %759
  %v761 = vmul.f32 %v760, 0.00048828125
  %v762 = vsub.f32 %v728, %v761
  %v763 = vsub.f32 %v729, %v761
  %v764 = vsub.f32 %v730, %v761
  %v765 = vsub.f32 %v731, %v761
  %v766 = vsub.f32 %v732, %v761
  %v767 = vsub.f32 %v733, %v761
  %v768 = vsub.f32 %v734, %v761
  %v769 = vsub.f32 %v735, %v761
  %v770 = vsub.f32 %v736, %v761
  %v771 = vsub.f32 %v737, %v761
  %v772 = vsub.f32 %v738, %v761
  %v773 = vsub.f32 %v739, %v761
  %v774 = vsub.f32 %v740, %v761
  %v775 = vsub.f32 %v741, %v761
  %v776 = vsub.f32 %v742, %v761
  %v777 = vsub.f32 %v743, %v761
  %v778 = vmul.f32 %v762, %v762
  %v779 = vmul.f32 %v763, %v763
  %v780 = vmul.f32 %v764, %v764
  %v781 = vmul.f32 %v765, %v765
  %v782 = vmul.f32 %v766, %v766
  %v783 = vmul.f32 %v767, %v767
  %v784 = vmul.f32 %v768, %v768
  %v785 = vmul.f32 %v769, %v769
  %v786 = vmul.f32 %v770, %v770
  %v787 = vmul.f32 %v771, %v771
  %v788 = vmul.f32 %v772, %v772
  %v789 = vmul.f32 %v773, %v773
  %v790 = vmul.f32 %v774, %v774
  %v791 = vmul.f32 %v775, %v775
  %v792 = vmul.f32 %v776, %v776
  %v793 = vmul.f32 %v777, %v777
  %v794 = vadd.f32 %v778, %v779
  %v795 = vadd.f32 %v794, %v780
  %v796 = vadd.f32 %v795, %v781
  %v797 = vadd.f32 %v796, %v782
  %v798 = vadd.f32 %v797, %v783
  %v799 = vadd.f32 %v798, %v784
  %v800 = vadd.f32 %v799, %v785
  %v801 = vadd.f32 %v800, %v786
  %v802 = vadd.f32 %v801, %v787
  %v803 = vadd.f32 %v802, %v788
  %v804 = vadd.f32 %v803, %v789
  %v805 = vadd.f32 %v804, %v790
  %v806 = vadd.f32 %v805, %v791
  %v807 = vadd.f32 %v806, %v792
  %v808 = vadd.f32 %v807, %v793
  %809 = vadd.xlane.f32.xlu0 %v808
  %v810 = vpop.xlane.xlu0 %809
  %v811 = vmul.f32 %v810, 0.00048828125
  %v812 = vld [vmem:[%s3] sm:$0xff]
  %v813 = vadd.f32 %v811, 1e-05
  %v814 = vrsqrt.pop %v813
  %v815 = vmul.f32 %v812, %v814
  %817 = vset.pattern.permute.xlu0 0
  %818 = vperm.xlu0 %817, %v815
  %v819 = vpop.permute.xlu0 %818
  %v821 = vmul.f32 %v762, %v819
  %v822 = vmul.f32 %v763, %v819
  %v823 = vmul.f32 %v764, %v819
  %v824 = vmul.f32 %v765, %v819
  %v825 = vmul.f32 %v766, %v819
  %v826 = vmul.f32 %v767, %v819
  %v827 = vmul.f32 %v768, %v819
  %v828 = vmul.f32 %v769, %v819
  %v829 = vmul.f32 %v770, %v819
  %v830 = vmul.f32 %v771, %v819
  %v831 = vmul.f32 %v772, %v819
  %v832 = vmul.f32 %v773, %v819
  %v833 = vmul.f32 %v774, %v819
  %v834 = vmul.f32 %v775, %v819
  %v835 = vmul.f32 %v776, %v819
  %v836 = vmul.f32 %v777, %v819
  %v837 = vld [vmem:[%s4] sm:$0xff]
  %839 = vset.pattern.permute.xlu0 0
  %840 = vperm.xlu0 %839, %v837
  %v841 = vpop.permute.xlu0 %840
  %v843 = vadd.f32 %v821, %v841
  %v844 = vadd.f32 %v822, %v841
  %v845 = vadd.f32 %v823, %v841
  %v846 = vadd.f32 %v824, %v841
  %v847 = vadd.f32 %v825, %v841
  %v848 = vadd.f32 %v826, %v841
  %v849 = vadd.f32 %v827, %v841
  %v850 = vadd.f32 %v828, %v841
  %v851 = vadd.f32 %v829, %v841
  %v852 = vadd.f32 %v830, %v841
  %v853 = vadd.f32 %v831, %v841
  %v854 = vadd.f32 %v832, %v841
  %v855 = vadd.f32 %v833, %v841
  %v856 = vadd.f32 %v834, %v841
  %v857 = vadd.f32 %v835, %v841
  %v858 = vadd.f32 %v836, %v841
  %859 = vst [vmem:[%s5] sm:$0xff] %v843
  %860 = vst [vmem:[%s5 + $0x8] sm:$0xff] %v844
  %861 = vst [vmem:[%s5 + $0x10] sm:$0xff] %v845
  %862 = vst [vmem:[%s5 + $0x18] sm:$0xff] %v846
  %863 = vst [vmem:[%s5 + $0x20] sm:$0xff] %v847
  %864 = vst [vmem:[%s5 + $0x28] sm:$0xff] %v848
  %865 = vst [vmem:[%s5 + $0x30] sm:$0xff] %v849
  %866 = vst [vmem:[%s5 + $0x38] sm:$0xff] %v850
  %867 = vst [vmem:[%s5 + $0x40] sm:$0xff] %v851
  %868 = vst [vmem:[%s5 + $0x48] sm:$0xff] %v852
  %869 = vst [vmem:[%s5 + $0x50] sm:$0xff] %v853
  %870 = vst [vmem:[%s5 + $0x58] sm:$0xff] %v854
  %871 = vst [vmem:[%s5 + $0x60] sm:$0xff] %v855
  %872 = vst [vmem:[%s5 + $0x68] sm:$0xff] %v856
  %873 = vst [vmem:[%s5 + $0x70] sm:$0xff] %v857
  %874 = vst [vmem:[%s5 + $0x78] sm:$0xff] %v858
  // Predicated region
  $region22: #{upsample_block_forward.1} parent=0 // pred_check
    _
  $region23: #{upsample_block_forward.1} parent=0 // pred_check_branch
    %876 = sbr.rel (0) target = $region25
  $region24: #{upsample_block_forward.1} parent=0 // pred_region
    _
  $region25: #{upsample_block_forward.1} parent=0 // pred_fallthru
    _
  // Predicated region
  $region26: #{upsample_block_forward.1} parent=0 // pred_check
    _
  $region27: #{upsample_block_forward.1} parent=0 // pred_check_branch
    %878 = sbr.rel (0) target = $region29
  $region28: #{upsample_block_forward.1} parent=0 // pred_region
    _
  $region29: #{upsample_block_forward.1} parent=0 // pred_fallthru
    _

</llo_original>
